<compile_context>
chip_gen: v7x
topology: tpu7x:2x2x1
jax: 0.10.0
libtpu: 0.0.40
codegen_flags: <defaults>
</compile_context>

<pallas_src>
import functools

import numpy as np
import jax
import jax.numpy as jnp
from jax.experimental import pallas as pl
from jax.experimental.pallas import tpu as pltpu


def conv_relu_kernel(w_ref, x_ref, conv_ref, relu_ref, *, oc_total, kh, kw):
    # w_ref:    SMEM, flat (OC*KH*KW,) f32 (scalar-prefetched filter taps)
    # x_ref:    VMEM, (1, H, W_in_pad) f32 block for this batch element
    # conv_ref: VMEM, (1, OC, OH, OW_pad) f32
    # relu_ref: VMEM, (1, OC, OH, OW_pad) f32
    _, oc, oh, ow_pad = conv_ref.shape

    # Load the image once.
    x = x_ref[0]  # (H, W_in_pad)

    # Read all filter taps from SMEM once, up front.
    taps = [w_ref[i] for i in range(oc_total * kh * kw)]

    # Hoist the kh*kw shifted slices out of the channel loop (reused by every oc).
    xs = [[x[dy:dy + oh, dx:dx + ow_pad] for dx in range(kw)] for dy in range(kh)]

    # Accumulate each output channel on the VPU.
    accs = []
    for c in range(oc):
        base = c * kh * kw
        acc = taps[base] * xs[0][0]
        for idx in range(1, kh * kw):
            dy, dx = divmod(idx, kw)
            acc = acc + taps[base + idx] * xs[dy][dx]
        accs.append(acc)

    # One contiguous, lane-dense store per output.
    conv = jnp.stack(accs, axis=0)            # (OC, OH, OW_pad)
    conv_ref[0] = conv
    relu_ref[0] = jnp.maximum(conv, 0.0)


def conv2d_relu(x, weight):
    """x: (N, 1, H, W) f32, weight: (OC, 1, KH, KW) f32 -> (conv_x, relu_x), NCHW."""
    n, cin, h, w = x.shape
    assert cin == 1, "Net uses a single input channel"
    oc, _, kh, kw = weight.shape
    oh, ow = h - kh + 1, w - kw + 1

    # Lane-dense output layout: pad the input width so the conv output's last dim
    # is a multiple of 128 (here exactly 128). Extra output columns are garbage /
    # zeros and are sliced away below.
    ow_pad = max(128, ((ow + 127) // 128) * 128)
    w_in_pad = ow_pad + kw - 1

    x3 = x[:, 0, :, :].astype(jnp.float32)                       # (N, H, W)
    x3 = jnp.pad(x3, ((0, 0), (0, 0), (0, w_in_pad - w)))        # (N, H, W_in_pad)

    w_flat = weight.reshape(-1).astype(jnp.float32)              # (OC*KH*KW,)

    kernel = functools.partial(conv_relu_kernel, oc_total=oc, kh=kh, kw=kw)

    conv_pad, relu_pad = pl.pallas_call(
        kernel,
        out_shape=(
            jax.ShapeDtypeStruct((n, oc, oh, ow_pad), jnp.float32),
            jax.ShapeDtypeStruct((n, oc, oh, ow_pad), jnp.float32),
        ),
        grid_spec=pltpu.PrefetchScalarGridSpec(
            num_scalar_prefetch=1,          # filter taps -> SMEM, visible to index_maps
            grid=(n,),                      # one grid step per batch element
            in_specs=[
                pl.BlockSpec((1, h, w_in_pad), lambda i, _w: (i, 0, 0)),
            ],
            out_specs=(
                pl.BlockSpec((1, oc, oh, ow_pad), lambda i, _w: (i, 0, 0, 0)),
                pl.BlockSpec((1, oc, oh, ow_pad), lambda i, _w: (i, 0, 0, 0)),
            ),
        ),
        compiler_params=pltpu.CompilerParams(
            dimension_semantics=("parallel",),   # shard batch across TCs on v7x
        ),
    )(w_flat, x3)

    # Slice back to the true valid-convolution width.
    return conv_pad[..., :ow], relu_pad[..., :ow]


if __name__ == "__main__":
    # Deterministic weights, exactly as in the PyTorch module's __init__.
    filter_1 = np.array([[1, -1, -1], [1, -1, -1], [1, -1, -1]])
    filter_2 = np.array([[1, 1, 1], [-1, -1, -1], [-1, -1, -1]])
    filter_3 = np.array([[1, -1, -1], [-1, 1, -1], [-1, -1, 1]])
    filters = np.array([filter_1, filter_2, filter_3])
    weight = jnp.asarray(filters[:, None, :, :], dtype=jnp.float32)  # (3, 1, 3, 3)

    # Deterministic small input: batch=2, channels=1, spatial=16x16 (NCHW).
    key = jax.random.PRNGKey(0)
    x = jax.random.normal(key, (2, 1, 16, 16), dtype=jnp.float32)

    conv_x, relu_x = conv2d_relu(x, weight)
    jax.block_until_ready((conv_x, relu_x))

    # Reference check against XLA's conv (same semantics as nn.Conv2d, valid padding).
    ref_conv = jax.lax.conv_general_dilated(
        x, weight, window_strides=(1, 1), padding="VALID",
        dimension_numbers=("NCHW", "OIHW", "NCHW"))
    ref_relu = jnp.maximum(ref_conv, 0.0)
    np.testing.assert_allclose(np.asarray(conv_x), np.asarray(ref_conv), rtol=1e-5, atol=1e-5)
    np.testing.assert_allclose(np.asarray(relu_x), np.asarray(ref_relu), rtol=1e-5, atol=1e-5)

    print("KERNEL_OK")
</pallas_src>

<mosaic_0001>
module attributes {stable_mosaic.version = 11 : i64} {
  func.func @conv_relu_kernel(%arg0: i32, %arg1: memref<27xf32, #tpu.memory_space<smem>>, %arg2: memref<1x16x130xf32, #tpu.memory_space<vmem>>, %arg3: memref<1x3x14x128xf32, #tpu.memory_space<vmem>>, %arg4: memref<1x3x14x128xf32, #tpu.memory_space<vmem>>) attributes {dimension_semantics = [#tpu.dimension_semantics<parallel>], iteration_bounds = array<i64: 2>, scalar_prefetch = 1 : i64, scratch_operands = 0 : i64, tpu.core_type = #tpu.core_type<tc>, window_params = [{transform_indices = @transform_0, window_bounds = array<i64: 1, 16, 130>}, {transform_indices = @transform_1, window_bounds = array<i64: 1, 3, 14, 128>}, {transform_indices = @transform_2, window_bounds = array<i64: 1, 3, 14, 128>}]} {
    %c0 = arith.constant 0 : index
    %c0_0 = arith.constant 0 : index
    %c0_1 = arith.constant 0 : index
    %0 = vector.load %arg2[%c0, %c0_0, %c0_1] : memref<1x16x130xf32, #tpu.memory_space<vmem>>, vector<1x16x130xf32>
    %1 = vector.shape_cast %0 : vector<1x16x130xf32> to vector<16x130xf32>
    %c0_2 = arith.constant 0 : index
    %2 = memref.load %arg1[%c0_2] : memref<27xf32, #tpu.memory_space<smem>>
    %c1 = arith.constant 1 : index
    %3 = memref.load %arg1[%c1] : memref<27xf32, #tpu.memory_space<smem>>
    %c2 = arith.constant 2 : index
    %4 = memref.load %arg1[%c2] : memref<27xf32, #tpu.memory_space<smem>>
    %c3 = arith.constant 3 : index
    %5 = memref.load %arg1[%c3] : memref<27xf32, #tpu.memory_space<smem>>
    %c4 = arith.constant 4 : index
    %6 = memref.load %arg1[%c4] : memref<27xf32, #tpu.memory_space<smem>>
    %c5 = arith.constant 5 : index
    %7 = memref.load %arg1[%c5] : memref<27xf32, #tpu.memory_space<smem>>
    %c6 = arith.constant 6 : index
    %8 = memref.load %arg1[%c6] : memref<27xf32, #tpu.memory_space<smem>>
    %c7 = arith.constant 7 : index
    %9 = memref.load %arg1[%c7] : memref<27xf32, #tpu.memory_space<smem>>
    %c8 = arith.constant 8 : index
    %10 = memref.load %arg1[%c8] : memref<27xf32, #tpu.memory_space<smem>>
    %c9 = arith.constant 9 : index
    %11 = memref.load %arg1[%c9] : memref<27xf32, #tpu.memory_space<smem>>
    %c10 = arith.constant 10 : index
    %12 = memref.load %arg1[%c10] : memref<27xf32, #tpu.memory_space<smem>>
    %c11 = arith.constant 11 : index
    %13 = memref.load %arg1[%c11] : memref<27xf32, #tpu.memory_space<smem>>
    %c12 = arith.constant 12 : index
    %14 = memref.load %arg1[%c12] : memref<27xf32, #tpu.memory_space<smem>>
    %c13 = arith.constant 13 : index
    %15 = memref.load %arg1[%c13] : memref<27xf32, #tpu.memory_space<smem>>
    %c14 = arith.constant 14 : index
    %16 = memref.load %arg1[%c14] : memref<27xf32, #tpu.memory_space<smem>>
    %c15 = arith.constant 15 : index
    %17 = memref.load %arg1[%c15] : memref<27xf32, #tpu.memory_space<smem>>
    %c16 = arith.constant 16 : index
    %18 = memref.load %arg1[%c16] : memref<27xf32, #tpu.memory_space<smem>>
    %c17 = arith.constant 17 : index
    %19 = memref.load %arg1[%c17] : memref<27xf32, #tpu.memory_space<smem>>
    %c18 = arith.constant 18 : index
    %20 = memref.load %arg1[%c18] : memref<27xf32, #tpu.memory_space<smem>>
    %c19 = arith.constant 19 : index
    %21 = memref.load %arg1[%c19] : memref<27xf32, #tpu.memory_space<smem>>
    %c20 = arith.constant 20 : index
    %22 = memref.load %arg1[%c20] : memref<27xf32, #tpu.memory_space<smem>>
    %c21 = arith.constant 21 : index
    %23 = memref.load %arg1[%c21] : memref<27xf32, #tpu.memory_space<smem>>
    %c22 = arith.constant 22 : index
    %24 = memref.load %arg1[%c22] : memref<27xf32, #tpu.memory_space<smem>>
    %c23 = arith.constant 23 : index
    %25 = memref.load %arg1[%c23] : memref<27xf32, #tpu.memory_space<smem>>
    %c24 = arith.constant 24 : index
    %26 = memref.load %arg1[%c24] : memref<27xf32, #tpu.memory_space<smem>>
    %c25 = arith.constant 25 : index
    %27 = memref.load %arg1[%c25] : memref<27xf32, #tpu.memory_space<smem>>
    %c26 = arith.constant 26 : index
    %28 = memref.load %arg1[%c26] : memref<27xf32, #tpu.memory_space<smem>>
    %29 = vector.extract_strided_slice %1 {offsets = [0, 0], sizes = [14, 128], strides = [1, 1]} : vector<16x130xf32> to vector<14x128xf32>
    %30 = vector.extract_strided_slice %1 {offsets = [0, 1], sizes = [14, 128], strides = [1, 1]} : vector<16x130xf32> to vector<14x128xf32>
    %31 = vector.extract_strided_slice %1 {offsets = [0, 2], sizes = [14, 128], strides = [1, 1]} : vector<16x130xf32> to vector<14x128xf32>
    %32 = vector.extract_strided_slice %1 {offsets = [1, 0], sizes = [14, 128], strides = [1, 1]} : vector<16x130xf32> to vector<14x128xf32>
    %33 = vector.extract_strided_slice %1 {offsets = [1, 1], sizes = [14, 128], strides = [1, 1]} : vector<16x130xf32> to vector<14x128xf32>
    %34 = vector.extract_strided_slice %1 {offsets = [1, 2], sizes = [14, 128], strides = [1, 1]} : vector<16x130xf32> to vector<14x128xf32>
    %35 = vector.extract_strided_slice %1 {offsets = [2, 0], sizes = [14, 128], strides = [1, 1]} : vector<16x130xf32> to vector<14x128xf32>
    %36 = vector.extract_strided_slice %1 {offsets = [2, 1], sizes = [14, 128], strides = [1, 1]} : vector<16x130xf32> to vector<14x128xf32>
    %37 = vector.extract_strided_slice %1 {offsets = [2, 2], sizes = [14, 128], strides = [1, 1]} : vector<16x130xf32> to vector<14x128xf32>
    %38 = vector.broadcast %2 : f32 to vector<14x128xf32>
    %39 = arith.mulf %38, %29 : vector<14x128xf32>
    %40 = vector.broadcast %3 : f32 to vector<14x128xf32>
    %41 = arith.mulf %40, %30 : vector<14x128xf32>
    %42 = arith.addf %39, %41 : vector<14x128xf32>
    %43 = vector.broadcast %4 : f32 to vector<14x128xf32>
    %44 = arith.mulf %43, %31 : vector<14x128xf32>
    %45 = arith.addf %42, %44 : vector<14x128xf32>
    %46 = vector.broadcast %5 : f32 to vector<14x128xf32>
    %47 = arith.mulf %46, %32 : vector<14x128xf32>
    %48 = arith.addf %45, %47 : vector<14x128xf32>
    %49 = vector.broadcast %6 : f32 to vector<14x128xf32>
    %50 = arith.mulf %49, %33 : vector<14x128xf32>
    %51 = arith.addf %48, %50 : vector<14x128xf32>
    %52 = vector.broadcast %7 : f32 to vector<14x128xf32>
    %53 = arith.mulf %52, %34 : vector<14x128xf32>
    %54 = arith.addf %51, %53 : vector<14x128xf32>
    %55 = vector.broadcast %8 : f32 to vector<14x128xf32>
    %56 = arith.mulf %55, %35 : vector<14x128xf32>
    %57 = arith.addf %54, %56 : vector<14x128xf32>
    %58 = vector.broadcast %9 : f32 to vector<14x128xf32>
    %59 = arith.mulf %58, %36 : vector<14x128xf32>
    %60 = arith.addf %57, %59 : vector<14x128xf32>
    %61 = vector.broadcast %10 : f32 to vector<14x128xf32>
    %62 = arith.mulf %61, %37 : vector<14x128xf32>
    %63 = arith.addf %60, %62 : vector<14x128xf32>
    %64 = vector.broadcast %11 : f32 to vector<14x128xf32>
    %65 = arith.mulf %64, %29 : vector<14x128xf32>
    %66 = vector.broadcast %12 : f32 to vector<14x128xf32>
    %67 = arith.mulf %66, %30 : vector<14x128xf32>
    %68 = arith.addf %65, %67 : vector<14x128xf32>
    %69 = vector.broadcast %13 : f32 to vector<14x128xf32>
    %70 = arith.mulf %69, %31 : vector<14x128xf32>
    %71 = arith.addf %68, %70 : vector<14x128xf32>
    %72 = vector.broadcast %14 : f32 to vector<14x128xf32>
    %73 = arith.mulf %72, %32 : vector<14x128xf32>
    %74 = arith.addf %71, %73 : vector<14x128xf32>
    %75 = vector.broadcast %15 : f32 to vector<14x128xf32>
    %76 = arith.mulf %75, %33 : vector<14x128xf32>
    %77 = arith.addf %74, %76 : vector<14x128xf32>
    %78 = vector.broadcast %16 : f32 to vector<14x128xf32>
    %79 = arith.mulf %78, %34 : vector<14x128xf32>
    %80 = arith.addf %77, %79 : vector<14x128xf32>
    %81 = vector.broadcast %17 : f32 to vector<14x128xf32>
    %82 = arith.mulf %81, %35 : vector<14x128xf32>
    %83 = arith.addf %80, %82 : vector<14x128xf32>
    %84 = vector.broadcast %18 : f32 to vector<14x128xf32>
    %85 = arith.mulf %84, %36 : vector<14x128xf32>
    %86 = arith.addf %83, %85 : vector<14x128xf32>
    %87 = vector.broadcast %19 : f32 to vector<14x128xf32>
    %88 = arith.mulf %87, %37 : vector<14x128xf32>
    %89 = arith.addf %86, %88 : vector<14x128xf32>
    %90 = vector.broadcast %20 : f32 to vector<14x128xf32>
    %91 = arith.mulf %90, %29 : vector<14x128xf32>
    %92 = vector.broadcast %21 : f32 to vector<14x128xf32>
    %93 = arith.mulf %92, %30 : vector<14x128xf32>
    %94 = arith.addf %91, %93 : vector<14x128xf32>
    %95 = vector.broadcast %22 : f32 to vector<14x128xf32>
    %96 = arith.mulf %95, %31 : vector<14x128xf32>
    %97 = arith.addf %94, %96 : vector<14x128xf32>
    %98 = vector.broadcast %23 : f32 to vector<14x128xf32>
    %99 = arith.mulf %98, %32 : vector<14x128xf32>
    %100 = arith.addf %97, %99 : vector<14x128xf32>
    %101 = vector.broadcast %24 : f32 to vector<14x128xf32>
    %102 = arith.mulf %101, %33 : vector<14x128xf32>
    %103 = arith.addf %100, %102 : vector<14x128xf32>
    %104 = vector.broadcast %25 : f32 to vector<14x128xf32>
    %105 = arith.mulf %104, %34 : vector<14x128xf32>
    %106 = arith.addf %103, %105 : vector<14x128xf32>
    %107 = vector.broadcast %26 : f32 to vector<14x128xf32>
    %108 = arith.mulf %107, %35 : vector<14x128xf32>
    %109 = arith.addf %106, %108 : vector<14x128xf32>
    %110 = vector.broadcast %27 : f32 to vector<14x128xf32>
    %111 = arith.mulf %110, %36 : vector<14x128xf32>
    %112 = arith.addf %109, %111 : vector<14x128xf32>
    %113 = vector.broadcast %28 : f32 to vector<14x128xf32>
    %114 = arith.mulf %113, %37 : vector<14x128xf32>
    %115 = arith.addf %112, %114 : vector<14x128xf32>
    %116 = vector.shape_cast %63 : vector<14x128xf32> to vector<1x14x128xf32>
    %117 = vector.shape_cast %89 : vector<14x128xf32> to vector<1x14x128xf32>
    %118 = vector.shape_cast %115 : vector<14x128xf32> to vector<1x14x128xf32>
    %119 = tpu.concatenate %116, %117, %118 in 0 : vector<1x14x128xf32>, vector<1x14x128xf32>, vector<1x14x128xf32> -> vector<3x14x128xf32>
    %c0_3 = arith.constant 0 : index
    %c0_4 = arith.constant 0 : index
    %c0_5 = arith.constant 0 : index
    %c0_6 = arith.constant 0 : index
    %120 = vector.load %arg3[%c0_3, %c0_4, %c0_5, %c0_6] : memref<1x3x14x128xf32, #tpu.memory_space<vmem>>, vector<1x3x14x128xf32>
    %121 = vector.shape_cast %120 : vector<1x3x14x128xf32> to vector<3x14x128xf32>
    %122 = vector.shape_cast %119 : vector<3x14x128xf32> to vector<1x3x14x128xf32>
    tpu.vector_store %arg3[%c0_3, %c0_4, %c0_5, %c0_6], %122 {strides = array<i32>} : memref<1x3x14x128xf32, #tpu.memory_space<vmem>>, vector<1x3x14x128xf32>,
    %cst = arith.constant 0.000000e+00 : f32
    %123 = vector.broadcast %cst : f32 to vector<3x14x128xf32>
    %124 = arith.maximumf %119, %123 : vector<3x14x128xf32>
    %c0_7 = arith.constant 0 : index
    %c0_8 = arith.constant 0 : index
    %c0_9 = arith.constant 0 : index
    %c0_10 = arith.constant 0 : index
    %125 = vector.load %arg4[%c0_7, %c0_8, %c0_9, %c0_10] : memref<1x3x14x128xf32, #tpu.memory_space<vmem>>, vector<1x3x14x128xf32>
    %126 = vector.shape_cast %125 : vector<1x3x14x128xf32> to vector<3x14x128xf32>
    %127 = vector.shape_cast %124 : vector<3x14x128xf32> to vector<1x3x14x128xf32>
    tpu.vector_store %arg4[%c0_7, %c0_8, %c0_9, %c0_10], %127 {strides = array<i32>} : memref<1x3x14x128xf32, #tpu.memory_space<vmem>>, vector<1x3x14x128xf32>,
    return
  }
  func.func @transform_0(%arg0: i32, %arg1: memref<27xf32, #tpu.memory_space<smem>>) -> (i32, i32, i32) {
    %c0_i32 = arith.constant 0 : i32
    %c0_i32_0 = arith.constant 0 : i32
    %c0_i32_1 = arith.constant 0 : i32
    return %arg0, %c0_i32, %c0_i32_0 : i32, i32, i32
  }
  func.func @transform_1(%arg0: i32, %arg1: memref<27xf32, #tpu.memory_space<smem>>) -> (i32, i32, i32, i32) {
    %c0_i32 = arith.constant 0 : i32
    %c0_i32_0 = arith.constant 0 : i32
    %c0_i32_1 = arith.constant 0 : i32
    %c0_i32_2 = arith.constant 0 : i32
    return %arg0, %c0_i32, %c0_i32_0, %c0_i32_1 : i32, i32, i32, i32
  }
  func.func @transform_2(%arg0: i32, %arg1: memref<27xf32, #tpu.memory_space<smem>>) -> (i32, i32, i32, i32) {
    %c0_i32 = arith.constant 0 : i32
    %c0_i32_0 = arith.constant 0 : i32
    %c0_i32_1 = arith.constant 0 : i32
    %c0_i32_2 = arith.constant 0 : i32
    return %arg0, %c0_i32, %c0_i32_0, %c0_i32_1 : i32, i32, i32, i32
  }
}

</mosaic_0001>

<llo_original>
// kernel: tpu_custom_call.1
$region0: #{tpu_custom_call.1}
  #allocation0 [shape = 'u32[]', space=smem, size = 0x4, offset = 0x4, fixed_abs, tag = 'smem constant byte address 0x4 - core index']
  #allocation1 [shape = 'u32[144,128]{1,0:T(1,128)}', space=vmem, size = 0x12000, scoped, tag = 'internal scratch']
  #allocation2 [shape = 's32[1]{0}', space=sflag, size = 0x4, scoped, tag = 'scoped memory for tpu_custom_call.1']
  #allocation3 [shape = 'u8[512]{0}', space=smem, size = 0x200, scoped, tag = 'prefetched SMEM operand 0']
  %s0 = inlined_call_operand.hbm [shape: f32[27], index: 0, kind: input, shape index: {}]
  %s1 = inlined_call_operand.hbm [shape: f32[2,16,130], index: 1, kind: input, shape index: {}]
  %s2 = inlined_call_operand.vmem [shape: f32[2,3,14,128], index: 2, kind: output, shape index: {0}]
  %s3 = inlined_call_operand.vmem [shape: f32[2,3,14,128], index: 3, kind: output, shape index: {1}]
  %4 = xla_tuple %s2, %s3
  %s5 = sld [smem:[#allocation0]]
  $region49: #{tpu_custom_call.1} parent=0
    _
  %s7 = ssub.s32 1, %s5
  %s8 = scalar_select 0, %s7, %s5
  %10 = dma.hbm_to_smem %s0, 16, [#allocation3], [#allocation2]
  %11 = dma.done [#allocation2], 16
  %12 = sfence
  $region1: #{tpu_custom_call.1} parent=0
    #allocation4 [shape = 'u8[32768]{0}', space=vmem, size = 0x8000, scoped, tag = 'input window, operand 1']
    #allocation5 [shape = 's32[2]{0}', space=sflag, size = 0x8, scoped, tag = 'scoped memory for tpu_custom_call.1']
    %13 = vsyncpa [#allocation5], 0
    %s14 = scalar_lea.sflag [#allocation5], 1
    %15 = vsyncpa %s14, 0
    loop: start=0, step=1, limit=4
    $region2: #{tpu_custom_call.1} parent=1 // loop_pre_header
      _
    $region3: #{tpu_custom_call.1} parent=1 // loop_header
      %s17 = sphi 0, %s21
      %p18 = scmp.ge.s32.totalorder %s17, 4
      %s27 = sphi 0, %s29
      %s30 = sphi 0, %s27
      %s31 = sphi 0, %s30
      %s47 = sphi 0, %s31
      %s53 = sphi 0, %s55
      %s56 = sphi 0, %s53
      %s57 = sphi 0, %s56
      %s73 = sphi 0, %s57
      %s79 = sphi 0, %s81
      %s82 = sphi 0, %s79
      %s83 = sphi 0, %s82
      %s99 = sphi 0, %s83
    $region4: #{tpu_custom_call.1} parent=1 // loop_header_branch
      %20 = sbr.rel (%p18) target = $region8
    $region5: #{tpu_custom_call.1} parent=1 // loop_body
      %s22 = ssub.s32 %s17, 1
      %s23 = ssub.s32 %s17, 2
      %s24 = sadd.s32 %s17, 1
      %s25 = ssub.s32 %s17, %s24
      %p26 = scmp.eq.s32.totalorder %s25, 0
      %s28 = sadd.s32 %s27, 1
      %s29 = scalar_select %p26, %s27, %s28
      %p32 = pneg %p26
      %p33 = scmp.eq.s32.totalorder %s17, 1
      %p34 = por %p32, %p33
      %p35 = scmp.ne.s32.totalorder %s27, %s30
      %p36 = scmp.eq.s32.totalorder %s17, 0
      %p37 = por %p35, %p36
      %p38 = scmp.ne.s32.totalorder %s27, %s30
      %p39 = scmp.eq.s32.totalorder %s22, 1
      %p40 = por %p38, %p39
      %p41 = scmp.ne.s32.totalorder %s30, %s31
      %p42 = scmp.eq.s32.totalorder %s22, 0
      %p43 = por %p41, %p42
      %p44 = scmp.ne.s32.totalorder %s30, %s31
      %p45 = scmp.eq.s32.totalorder %s23, 1
      %p46 = por %p44, %p45
      %p48 = scmp.ne.s32.totalorder %s31, %s47
      %p49 = scmp.eq.s32.totalorder %s23, 0
      %p50 = por %p48, %p49
      %s51 = ssub.s32 %s17, %s24
      %p52 = scmp.eq.s32.totalorder %s51, 0
      %s54 = sadd.s32 %s53, 1
      %s55 = scalar_select %p52, %s53, %s54
      %p58 = pneg %p52
      %p59 = scmp.eq.s32.totalorder %s17, 1
      %p60 = por %p58, %p59
      %p61 = scmp.ne.s32.totalorder %s53, %s56
      %p62 = scmp.eq.s32.totalorder %s17, 0
      %p63 = por %p61, %p62
      %p64 = scmp.ne.s32.totalorder %s53, %s56
      %p65 = scmp.eq.s32.totalorder %s22, 1
      %p66 = por %p64, %p65
      %p67 = scmp.ne.s32.totalorder %s56, %s57
      %p68 = scmp.eq.s32.totalorder %s22, 0
      %p69 = por %p67, %p68
      %p70 = scmp.ne.s32.totalorder %s56, %s57
      %p71 = scmp.eq.s32.totalorder %s23, 1
      %p72 = por %p70, %p71
      %p74 = scmp.ne.s32.totalorder %s57, %s73
      %p75 = scmp.eq.s32.totalorder %s23, 0
      %p76 = por %p74, %p75
      %s77 = ssub.s32 %s17, %s24
      %p78 = scmp.eq.s32.totalorder %s77, 0
      %s80 = sadd.s32 %s79, 1
      %s81 = scalar_select %p78, %s79, %s80
      %p84 = pneg %p78
      %p85 = scmp.eq.s32.totalorder %s17, 1
      %p86 = por %p84, %p85
      %p87 = scmp.ne.s32.totalorder %s79, %s82
      %p88 = scmp.eq.s32.totalorder %s17, 0
      %p89 = por %p87, %p88
      %p90 = scmp.ne.s32.totalorder %s79, %s82
      %p91 = scmp.eq.s32.totalorder %s22, 1
      %p92 = por %p90, %p91
      %p93 = scmp.ne.s32.totalorder %s82, %s83
      %p94 = scmp.eq.s32.totalorder %s22, 0
      %p95 = por %p93, %p94
      %p96 = scmp.ne.s32.totalorder %s82, %s83
      %p97 = scmp.eq.s32.totalorder %s23, 1
      %p98 = por %p96, %p97
      %p100 = scmp.ne.s32.totalorder %s83, %s99
      %p101 = scmp.eq.s32.totalorder %s23, 0
      %p102 = por %p100, %p101
      %p103 = scmp.le.s32.totalorder 1, %s17
      %p104 = scmp.lt.s32.totalorder %s17, 3
      %p105 = pnand %p103, %p104
      %p106 = pneg %p105
      // Predicated region
      $region9: #{tpu_custom_call.1} parent=5 // pred_check
        _
      $region10: #{tpu_custom_call.1} parent=5 // pred_check_branch
        %108 = sbr.rel (%p105) target = $region12
      $region11: #{tpu_custom_call.1} parent=5 // pred_region
        %s109 = ssub.s32 %s17, 1
      $region12: #{tpu_custom_call.1} parent=5 // pred_fallthru
        _
      %p110 = scmp.lt.s32.totalorder %s17, 2
      // Predicated region
      $region13: #{tpu_custom_call.1} parent=5 // pred_check
        %p111 = pneg %p110
      $region14: #{tpu_custom_call.1} parent=5 // pred_check_branch
        %113 = sbr.rel (%p111) target = $region16
      $region15: #{tpu_custom_call.1} parent=5 // pred_region
        // Predicated region
        $region17: #{tpu_custom_call.1} parent=15 // pred_check
          %p114 = pneg %p37
        $region18: #{tpu_custom_call.1} parent=15 // pred_check_branch
          %116 = sbr.rel (%p114) target = $region20
        $region19: #{tpu_custom_call.1} parent=15 // pred_region
          %s117 = sand.u32 %s27, 1
          %s118 = scalar_lea.sflag [#allocation5], %s117
          %s119 = sand.u32 %s27, 1
          %s120 = smul.addr %s119, 32
          %s121 = scalar_lea.vmem [#allocation4], %s120
          %s123 = ssub.s32 512, 512
          %124 = vsyncadd %s118, %s123
          %s125 = smul.addr %s17, 4
          %s126 = smul.addr %s125, 128
          %s127 = scalar_lea.hbm %s1, %s126
          %s128 = sshll.u32 %s121, 4
          %s129 = int_to_ptr.vmem [resolvable:$true] %s128
          %134 = dma.hbm_to_vmem [thread:$0]  %s127, 512, %s129, %s118, 256, 256, 16
        $region20: #{tpu_custom_call.1} parent=15 // pred_fallthru
          _
      $region16: #{tpu_custom_call.1} parent=5 // pred_fallthru
        _
      %p135 = scmp.le.s32.totalorder 1, %s17
      %p136 = scmp.lt.s32.totalorder %s17, 3
      %p137 = pnand %p135, %p136
      %p138 = pneg %p137
      // Predicated region
      $region21: #{tpu_custom_call.1} parent=5 // pred_check
        _
      $region22: #{tpu_custom_call.1} parent=5 // pred_check_branch
        %140 = sbr.rel (%p137) target = $region24
      $region23: #{tpu_custom_call.1} parent=5 // pred_region
        %s141 = ssub.s32 %s17, 1
        %s142 = sand.u32 %s30, 1
        %s143 = scalar_lea.sflag [#allocation5], %s142
        %s144 = sand.u32 %s30, 1
        %s145 = smul.addr %s144, 32
        %s146 = scalar_lea.vmem [#allocation4], %s145
        // Predicated region
        $region25: #{tpu_custom_call.1} parent=23 // pred_check
          %p147 = pneg %p43
        $region26: #{tpu_custom_call.1} parent=23 // pred_check_branch
          %149 = sbr.rel (%p147) target = $region28
        $region27: #{tpu_custom_call.1} parent=23 // pred_region
          %150 = dma.done %s143, 512
        $region28: #{tpu_custom_call.1} parent=23 // pred_fallthru
          _
        %s151 = sand.u32 %s30, 1
        %s152 = scalar_lea.sflag [#allocation5], %s151
        %s153 = sand.u32 %s30, 1
        %s154 = smul.addr %s153, 32
        %s155 = scalar_lea.vmem [#allocation4], %s154
        %p156 = pneg %p43
        %p157 = pneg %p40
        %p158 = pneg %p69
        %p159 = pneg %p66
        %p160 = scmp.lt.s32.totalorder %s22, 1
        %s161 = scalar_select %p160, %s22, 1
        %s162 = smul.addr %s161, 6
        %s163 = smul.addr %s162, 8
        %s164 = scalar_lea.vmem %s2, %s163
        %p165 = pneg %p95
        %p166 = pneg %p92
        %p167 = scmp.lt.s32.totalorder %s22, 1
        %s168 = scalar_select %p167, %s22, 1
        %s169 = smul.addr %s168, 6
        %s170 = smul.addr %s169, 8
        %s171 = scalar_lea.vmem %s3, %s170
        %p172 = scmp.lt.s32.totalorder %s22, 1
        %s173 = scalar_select %p172, %s22, 1
        %s174 = smul.addr %s173, 6
        %s175 = smul.addr %s174, 8
        %s176 = scalar_lea.vmem %s2, %s175
        %p177 = scmp.lt.s32.totalorder %s22, 1
        %s178 = scalar_select %p177, %s22, 1
        %s179 = smul.addr %s178, 6
        %s180 = smul.addr %s179, 8
        %s181 = scalar_lea.vmem %s3, %s180
        %v182 = vld [vmem:[%s146] sm:$0xff]
        %v183 = vld [vmem:[%s146 + $0x8] sm:$0xff]
        %v184 = vld [vmem:[%s146 + $0x10] sm:$0xff]
        %v185 = vld [vmem:[%s146 + $0x18] sm:$0xff]
        %s186 = sld [smem:[#allocation3]]
        %s187 = sld [smem:[#allocation3 + $0x1]]
        %s188 = sld [smem:[#allocation3 + $0x2]]
        %s189 = sld [smem:[#allocation3 + $0x3]]
        %s190 = sld [smem:[#allocation3 + $0x4]]
        %s191 = sld [smem:[#allocation3 + $0x5]]
        %s192 = sld [smem:[#allocation3 + $0x6]]
        %s193 = sld [smem:[#allocation3 + $0x7]]
        %s194 = sld [smem:[#allocation3 + $0x8]]
        %s195 = sld [smem:[#allocation3 + $0x9]]
        %s196 = sld [smem:[#allocation3 + $0xa]]
        %s197 = sld [smem:[#allocation3 + $0xb]]
        %s198 = sld [smem:[#allocation3 + $0xc]]
        %s199 = sld [smem:[#allocation3 + $0xd]]
        %s200 = sld [smem:[#allocation3 + $0xe]]
        %s201 = sld [smem:[#allocation3 + $0xf]]
        %s202 = sld [smem:[#allocation3 + $0x10]]
        %s203 = sld [smem:[#allocation3 + $0x11]]
        %s204 = sld [smem:[#allocation3 + $0x12]]
        %s205 = sld [smem:[#allocation3 + $0x13]]
        %s206 = sld [smem:[#allocation3 + $0x14]]
        %s207 = sld [smem:[#allocation3 + $0x15]]
        %s208 = sld [smem:[#allocation3 + $0x16]]
        %s209 = sld [smem:[#allocation3 + $0x17]]
        %s210 = sld [smem:[#allocation3 + $0x18]]
        %s211 = sld [smem:[#allocation3 + $0x19]]
        %s212 = sld [smem:[#allocation3 + $0x1a]]
        %v213 = vstv %s186
        %v214 = vmul.f32 %v213, %v182
        %v215 = vmul.f32 %v213, %v184
        %v216 = vstv %s187
        %v217 = vmul.f32 %v216, %v182
        %v218 = vmul.f32 %v216, %v183
        %v219 = vmul.f32 %v216, %v184
        %v220 = vmul.f32 %v216, %v185
        %225 = vrot.lane.b32.xlu0 %v217, 127
        %v226 = vpop.permute.xlu0 %225
        %227 = vrot.lane.b32.xlu0 %v218, 127
        %v228 = vpop.permute.xlu0 %227
        %229 = vrot.lane.b32.xlu0 %v219, 127
        %v230 = vpop.permute.xlu0 %229
        %231 = vrot.lane.b32.xlu0 %v220, 127
        %v232 = vpop.permute.xlu0 %231
        %vm233 = vcmask 1039360
        %v234 = vsel %vm233, %v226, %v228
        %v235 = vsel %vm233, %v230, %v232
        %v238 = vadd.f32 %v214, %v234
        %v239 = vadd.f32 %v215, %v235
        %v240 = vstv %s188
        %v241 = vmul.f32 %v240, %v182
        %v242 = vmul.f32 %v240, %v183
        %v243 = vmul.f32 %v240, %v184
        %v244 = vmul.f32 %v240, %v185
        %249 = vrot.lane.b32.xlu0 %v241, 126
        %v250 = vpop.permute.xlu0 %249
        %251 = vrot.lane.b32.xlu0 %v242, 126
        %v252 = vpop.permute.xlu0 %251
        %253 = vrot.lane.b32.xlu0 %v243, 126
        %v254 = vpop.permute.xlu0 %253
        %255 = vrot.lane.b32.xlu0 %v244, 126
        %v256 = vpop.permute.xlu0 %255
        %vm257 = vcmask 1031168
        %v258 = vsel %vm257, %v250, %v252
        %v259 = vsel %vm257, %v254, %v256
        %v262 = vadd.f32 %v238, %v258
        %v263 = vadd.f32 %v239, %v259
        %v264 = vstv %s189
        %v265 = vmul.f32 %v264, %v182
        %v266 = vmul.f32 %v264, %v184
        %vm269 = vcmask 1046528
        %v270 = vrot.slane %v265, 1
        %v271 = vrot.slane %v266, 1
        %v272 = vsel %vm269, %v270, %v271
        %v275 = vadd.f32 %v262, %v272
        %v276 = vadd.f32 %v263, %v271
        %v277 = vstv %s190
        %v278 = vmul.f32 %v277, %v182
        %v279 = vmul.f32 %v277, %v183
        %v280 = vmul.f32 %v277, %v184
        %v281 = vmul.f32 %v277, %v185
        %v286 = vrot.slane %v278, 1
        %v287 = vrot.slane %v280, 1
        %v288 = vsel %vm269, %v286, %v287
        %v289 = vrot.slane %v279, 1
        %v290 = vrot.slane %v281, 1
        %v291 = vsel %vm269, %v289, %v290
        %292 = vrot.lane.b32.xlu0 %v288, 127
        %v293 = vpop.permute.xlu0 %292
        %294 = vrot.lane.b32.xlu0 %v291, 127
        %v295 = vpop.permute.xlu0 %294
        %296 = vrot.lane.b32.xlu0 %v287, 127
        %v297 = vpop.permute.xlu0 %296
        %298 = vrot.lane.b32.xlu0 %v290, 127
        %v299 = vpop.permute.xlu0 %298
        %v300 = vsel %vm233, %v293, %v295
        %v301 = vsel %vm233, %v297, %v299
        %v304 = vadd.f32 %v275, %v300
        %v305 = vadd.f32 %v276, %v301
        %v306 = vstv %s191
        %v307 = vmul.f32 %v306, %v182
        %v308 = vmul.f32 %v306, %v183
        %v309 = vmul.f32 %v306, %v184
        %v310 = vmul.f32 %v306, %v185
        %v315 = vrot.slane %v307, 1
        %v316 = vrot.slane %v309, 1
        %v317 = vsel %vm269, %v315, %v316
        %v318 = vrot.slane %v308, 1
        %v319 = vrot.slane %v310, 1
        %v320 = vsel %vm269, %v318, %v319
        %321 = vrot.lane.b32.xlu0 %v317, 126
        %v322 = vpop.permute.xlu0 %321
        %323 = vrot.lane.b32.xlu0 %v320, 126
        %v324 = vpop.permute.xlu0 %323
        %325 = vrot.lane.b32.xlu0 %v316, 126
        %v326 = vpop.permute.xlu0 %325
        %327 = vrot.lane.b32.xlu0 %v319, 126
        %v328 = vpop.permute.xlu0 %327
        %v329 = vsel %vm257, %v322, %v324
        %v330 = vsel %vm257, %v326, %v328
        %v333 = vadd.f32 %v304, %v329
        %v334 = vadd.f32 %v305, %v330
        %v335 = vstv %s192
        %v336 = vmul.f32 %v335, %v182
        %v337 = vmul.f32 %v335, %v184
        %vm340 = vcmask 1045504
        %v341 = vrot.slane %v336, 2
        %v342 = vrot.slane %v337, 2
        %v343 = vsel %vm340, %v341, %v342
        %v346 = vadd.f32 %v333, %v343
        %v347 = vadd.f32 %v334, %v342
        %v348 = vstv %s193
        %v349 = vmul.f32 %v348, %v182
        %v350 = vmul.f32 %v348, %v183
        %v351 = vmul.f32 %v348, %v184
        %v352 = vmul.f32 %v348, %v185
        %v357 = vrot.slane %v349, 2
        %v358 = vrot.slane %v351, 2
        %v359 = vsel %vm340, %v357, %v358
        %v360 = vrot.slane %v350, 2
        %v361 = vrot.slane %v352, 2
        %v362 = vsel %vm340, %v360, %v361
        %363 = vrot.lane.b32.xlu0 %v359, 127
        %v364 = vpop.permute.xlu0 %363
        %365 = vrot.lane.b32.xlu0 %v362, 127
        %v366 = vpop.permute.xlu0 %365
        %367 = vrot.lane.b32.xlu0 %v358, 127
        %v368 = vpop.permute.xlu0 %367
        %369 = vrot.lane.b32.xlu0 %v361, 127
        %v370 = vpop.permute.xlu0 %369
        %v371 = vsel %vm233, %v364, %v366
        %v372 = vsel %vm233, %v368, %v370
        %v375 = vadd.f32 %v346, %v371
        %v376 = vadd.f32 %v347, %v372
        %v377 = vstv %s194
        %v378 = vmul.f32 %v377, %v182
        %v379 = vmul.f32 %v377, %v183
        %v380 = vmul.f32 %v377, %v184
        %v381 = vmul.f32 %v377, %v185
        %v386 = vrot.slane %v378, 2
        %v387 = vrot.slane %v380, 2
        %v388 = vsel %vm340, %v386, %v387
        %v389 = vrot.slane %v379, 2
        %v390 = vrot.slane %v381, 2
        %v391 = vsel %vm340, %v389, %v390
        %392 = vrot.lane.b32.xlu0 %v388, 126
        %v393 = vpop.permute.xlu0 %392
        %394 = vrot.lane.b32.xlu0 %v391, 126
        %v395 = vpop.permute.xlu0 %394
        %396 = vrot.lane.b32.xlu0 %v387, 126
        %v397 = vpop.permute.xlu0 %396
        %398 = vrot.lane.b32.xlu0 %v390, 126
        %v399 = vpop.permute.xlu0 %398
        %v400 = vsel %vm257, %v393, %v395
        %v401 = vsel %vm257, %v397, %v399
        %v404 = vadd.f32 %v375, %v400
        %v405 = vadd.f32 %v376, %v401
        %v406 = vstv %s195
        %v407 = vmul.f32 %v406, %v182
        %v408 = vmul.f32 %v406, %v184
        %v409 = vstv %s196
        %v410 = vmul.f32 %v409, %v182
        %v411 = vmul.f32 %v409, %v183
        %v412 = vmul.f32 %v409, %v184
        %v413 = vmul.f32 %v409, %v185
        %418 = vrot.lane.b32.xlu0 %v410, 127
        %v419 = vpop.permute.xlu0 %418
        %420 = vrot.lane.b32.xlu0 %v411, 127
        %v421 = vpop.permute.xlu0 %420
        %422 = vrot.lane.b32.xlu0 %v412, 127
        %v423 = vpop.permute.xlu0 %422
        %424 = vrot.lane.b32.xlu0 %v413, 127
        %v425 = vpop.permute.xlu0 %424
        %v426 = vsel %vm233, %v419, %v421
        %v427 = vsel %vm233, %v423, %v425
        %v430 = vadd.f32 %v407, %v426
        %v431 = vadd.f32 %v408, %v427
        %v432 = vstv %s197
        %v433 = vmul.f32 %v432, %v182
        %v434 = vmul.f32 %v432, %v183
        %v435 = vmul.f32 %v432, %v184
        %v436 = vmul.f32 %v432, %v185
        %441 = vrot.lane.b32.xlu0 %v433, 126
        %v442 = vpop.permute.xlu0 %441
        %443 = vrot.lane.b32.xlu0 %v434, 126
        %v444 = vpop.permute.xlu0 %443
        %445 = vrot.lane.b32.xlu0 %v435, 126
        %v446 = vpop.permute.xlu0 %445
        %447 = vrot.lane.b32.xlu0 %v436, 126
        %v448 = vpop.permute.xlu0 %447
        %v449 = vsel %vm257, %v442, %v444
        %v450 = vsel %vm257, %v446, %v448
        %v453 = vadd.f32 %v430, %v449
        %v454 = vadd.f32 %v431, %v450
        %v455 = vstv %s198
        %v456 = vmul.f32 %v455, %v182
        %v457 = vmul.f32 %v455, %v184
        %v460 = vrot.slane %v456, 1
        %v461 = vrot.slane %v457, 1
        %v462 = vsel %vm269, %v460, %v461
        %v465 = vadd.f32 %v453, %v462
        %v466 = vadd.f32 %v454, %v461
        %v467 = vstv %s199
        %v468 = vmul.f32 %v467, %v182
        %v469 = vmul.f32 %v467, %v183
        %v470 = vmul.f32 %v467, %v184
        %v471 = vmul.f32 %v467, %v185
        %v476 = vrot.slane %v468, 1
        %v477 = vrot.slane %v470, 1
        %v478 = vsel %vm269, %v476, %v477
        %v479 = vrot.slane %v469, 1
        %v480 = vrot.slane %v471, 1
        %v481 = vsel %vm269, %v479, %v480
        %482 = vrot.lane.b32.xlu0 %v478, 127
        %v483 = vpop.permute.xlu0 %482
        %484 = vrot.lane.b32.xlu0 %v481, 127
        %v485 = vpop.permute.xlu0 %484
        %486 = vrot.lane.b32.xlu0 %v477, 127
        %v487 = vpop.permute.xlu0 %486
        %488 = vrot.lane.b32.xlu0 %v480, 127
        %v489 = vpop.permute.xlu0 %488
        %v490 = vsel %vm233, %v483, %v485
        %v491 = vsel %vm233, %v487, %v489
        %v494 = vadd.f32 %v465, %v490
        %v495 = vadd.f32 %v466, %v491
        %v496 = vstv %s200
        %v497 = vmul.f32 %v496, %v182
        %v498 = vmul.f32 %v496, %v183
        %v499 = vmul.f32 %v496, %v184
        %v500 = vmul.f32 %v496, %v185
        %v505 = vrot.slane %v497, 1
        %v506 = vrot.slane %v499, 1
        %v507 = vsel %vm269, %v505, %v506
        %v508 = vrot.slane %v498, 1
        %v509 = vrot.slane %v500, 1
        %v510 = vsel %vm269, %v508, %v509
        %511 = vrot.lane.b32.xlu0 %v507, 126
        %v512 = vpop.permute.xlu0 %511
        %513 = vrot.lane.b32.xlu0 %v510, 126
        %v514 = vpop.permute.xlu0 %513
        %515 = vrot.lane.b32.xlu0 %v506, 126
        %v516 = vpop.permute.xlu0 %515
        %517 = vrot.lane.b32.xlu0 %v509, 126
        %v518 = vpop.permute.xlu0 %517
        %v519 = vsel %vm257, %v512, %v514
        %v520 = vsel %vm257, %v516, %v518
        %v523 = vadd.f32 %v494, %v519
        %v524 = vadd.f32 %v495, %v520
        %v525 = vstv %s201
        %v526 = vmul.f32 %v525, %v182
        %v527 = vmul.f32 %v525, %v184
        %v530 = vrot.slane %v526, 2
        %v531 = vrot.slane %v527, 2
        %v532 = vsel %vm340, %v530, %v531
        %v535 = vadd.f32 %v523, %v532
        %v536 = vadd.f32 %v524, %v531
        %v537 = vstv %s202
        %v538 = vmul.f32 %v537, %v182
        %v539 = vmul.f32 %v537, %v183
        %v540 = vmul.f32 %v537, %v184
        %v541 = vmul.f32 %v537, %v185
        %v546 = vrot.slane %v538, 2
        %v547 = vrot.slane %v540, 2
        %v548 = vsel %vm340, %v546, %v547
        %v549 = vrot.slane %v539, 2
        %v550 = vrot.slane %v541, 2
        %v551 = vsel %vm340, %v549, %v550
        %552 = vrot.lane.b32.xlu0 %v548, 127
        %v553 = vpop.permute.xlu0 %552
        %554 = vrot.lane.b32.xlu0 %v551, 127
        %v555 = vpop.permute.xlu0 %554
        %556 = vrot.lane.b32.xlu0 %v547, 127
        %v557 = vpop.permute.xlu0 %556
        %558 = vrot.lane.b32.xlu0 %v550, 127
        %v559 = vpop.permute.xlu0 %558
        %v560 = vsel %vm233, %v553, %v555
        %v561 = vsel %vm233, %v557, %v559
        %v564 = vadd.f32 %v535, %v560
        %v565 = vadd.f32 %v536, %v561
        %v566 = vstv %s203
        %v567 = vmul.f32 %v566, %v182
        %v568 = vmul.f32 %v566, %v183
        %v569 = vmul.f32 %v566, %v184
        %v570 = vmul.f32 %v566, %v185
        %v575 = vrot.slane %v567, 2
        %v576 = vrot.slane %v569, 2
        %v577 = vsel %vm340, %v575, %v576
        %v578 = vrot.slane %v568, 2
        %v579 = vrot.slane %v570, 2
        %v580 = vsel %vm340, %v578, %v579
        %581 = vrot.lane.b32.xlu0 %v577, 126
        %v582 = vpop.permute.xlu0 %581
        %583 = vrot.lane.b32.xlu0 %v580, 126
        %v584 = vpop.permute.xlu0 %583
        %585 = vrot.lane.b32.xlu0 %v576, 126
        %v586 = vpop.permute.xlu0 %585
        %587 = vrot.lane.b32.xlu0 %v579, 126
        %v588 = vpop.permute.xlu0 %587
        %v589 = vsel %vm257, %v582, %v584
        %v590 = vsel %vm257, %v586, %v588
        %v593 = vadd.f32 %v564, %v589
        %v594 = vadd.f32 %v565, %v590
        %v595 = vstv %s204
        %v596 = vmul.f32 %v595, %v182
        %v597 = vmul.f32 %v595, %v184
        %v598 = vstv %s205
        %v599 = vmul.f32 %v598, %v182
        %v600 = vmul.f32 %v598, %v183
        %v601 = vmul.f32 %v598, %v184
        %v602 = vmul.f32 %v598, %v185
        %607 = vrot.lane.b32.xlu0 %v599, 127
        %v608 = vpop.permute.xlu0 %607
        %609 = vrot.lane.b32.xlu0 %v600, 127
        %v610 = vpop.permute.xlu0 %609
        %611 = vrot.lane.b32.xlu0 %v601, 127
        %v612 = vpop.permute.xlu0 %611
        %613 = vrot.lane.b32.xlu0 %v602, 127
        %v614 = vpop.permute.xlu0 %613
        %v615 = vsel %vm233, %v608, %v610
        %v616 = vsel %vm233, %v612, %v614
        %v619 = vadd.f32 %v596, %v615
        %v620 = vadd.f32 %v597, %v616
        %v621 = vstv %s206
        %v622 = vmul.f32 %v621, %v182
        %v623 = vmul.f32 %v621, %v183
        %v624 = vmul.f32 %v621, %v184
        %v625 = vmul.f32 %v621, %v185
        %630 = vrot.lane.b32.xlu0 %v622, 126
        %v631 = vpop.permute.xlu0 %630
        %632 = vrot.lane.b32.xlu0 %v623, 126
        %v633 = vpop.permute.xlu0 %632
        %634 = vrot.lane.b32.xlu0 %v624, 126
        %v635 = vpop.permute.xlu0 %634
        %636 = vrot.lane.b32.xlu0 %v625, 126
        %v637 = vpop.permute.xlu0 %636
        %v638 = vsel %vm257, %v631, %v633
        %v639 = vsel %vm257, %v635, %v637
        %v642 = vadd.f32 %v619, %v638
        %v643 = vadd.f32 %v620, %v639
        %v644 = vstv %s207
        %v645 = vmul.f32 %v644, %v182
        %v646 = vmul.f32 %v644, %v184
        %v649 = vrot.slane %v645, 1
        %v650 = vrot.slane %v646, 1
        %v651 = vsel %vm269, %v649, %v650
        %v654 = vadd.f32 %v642, %v651
        %v655 = vadd.f32 %v643, %v650
        %v656 = vstv %s208
        %v657 = vmul.f32 %v656, %v182
        %v658 = vmul.f32 %v656, %v183
        %v659 = vmul.f32 %v656, %v184
        %v660 = vmul.f32 %v656, %v185
        %v665 = vrot.slane %v657, 1
        %v666 = vrot.slane %v659, 1
        %v667 = vsel %vm269, %v665, %v666
        %v668 = vrot.slane %v658, 1
        %v669 = vrot.slane %v660, 1
        %v670 = vsel %vm269, %v668, %v669
        %671 = vrot.lane.b32.xlu0 %v667, 127
        %v672 = vpop.permute.xlu0 %671
        %673 = vrot.lane.b32.xlu0 %v670, 127
        %v674 = vpop.permute.xlu0 %673
        %675 = vrot.lane.b32.xlu0 %v666, 127
        %v676 = vpop.permute.xlu0 %675
        %677 = vrot.lane.b32.xlu0 %v669, 127
        %v678 = vpop.permute.xlu0 %677
        %v679 = vsel %vm233, %v672, %v674
        %v680 = vsel %vm233, %v676, %v678
        %v683 = vadd.f32 %v654, %v679
        %v684 = vadd.f32 %v655, %v680
        %v685 = vstv %s209
        %v686 = vmul.f32 %v685, %v182
        %v687 = vmul.f32 %v685, %v183
        %v688 = vmul.f32 %v685, %v184
        %v689 = vmul.f32 %v685, %v185
        %v694 = vrot.slane %v686, 1
        %v695 = vrot.slane %v688, 1
        %v696 = vsel %vm269, %v694, %v695
        %v697 = vrot.slane %v687, 1
        %v698 = vrot.slane %v689, 1
        %v699 = vsel %vm269, %v697, %v698
        %700 = vrot.lane.b32.xlu0 %v696, 126
        %v701 = vpop.permute.xlu0 %700
        %702 = vrot.lane.b32.xlu0 %v699, 126
        %v703 = vpop.permute.xlu0 %702
        %704 = vrot.lane.b32.xlu0 %v695, 126
        %v705 = vpop.permute.xlu0 %704
        %706 = vrot.lane.b32.xlu0 %v698, 126
        %v707 = vpop.permute.xlu0 %706
        %v708 = vsel %vm257, %v701, %v703
        %v709 = vsel %vm257, %v705, %v707
        %v712 = vadd.f32 %v683, %v708
        %v713 = vadd.f32 %v684, %v709
        %v714 = vstv %s210
        %v715 = vmul.f32 %v714, %v182
        %v716 = vmul.f32 %v714, %v184
        %v719 = vrot.slane %v715, 2
        %v720 = vrot.slane %v716, 2
        %v721 = vsel %vm340, %v719, %v720
        %v724 = vadd.f32 %v712, %v721
        %v725 = vadd.f32 %v713, %v720
        %v726 = vstv %s211
        %v727 = vmul.f32 %v726, %v182
        %v728 = vmul.f32 %v726, %v183
        %v729 = vmul.f32 %v726, %v184
        %v730 = vmul.f32 %v726, %v185
        %v735 = vrot.slane %v727, 2
        %v736 = vrot.slane %v729, 2
        %v737 = vsel %vm340, %v735, %v736
        %v738 = vrot.slane %v728, 2
        %v739 = vrot.slane %v730, 2
        %v740 = vsel %vm340, %v738, %v739
        %741 = vrot.lane.b32.xlu0 %v737, 127
        %v742 = vpop.permute.xlu0 %741
        %743 = vrot.lane.b32.xlu0 %v740, 127
        %v744 = vpop.permute.xlu0 %743
        %745 = vrot.lane.b32.xlu0 %v736, 127
        %v746 = vpop.permute.xlu0 %745
        %747 = vrot.lane.b32.xlu0 %v739, 127
        %v748 = vpop.permute.xlu0 %747
        %v749 = vsel %vm233, %v742, %v744
        %v750 = vsel %vm233, %v746, %v748
        %v753 = vadd.f32 %v724, %v749
        %v754 = vadd.f32 %v725, %v750
        %v755 = vstv %s212
        %v756 = vmul.f32 %v755, %v182
        %v757 = vmul.f32 %v755, %v183
        %v758 = vmul.f32 %v755, %v184
        %v759 = vmul.f32 %v755, %v185
        %v764 = vrot.slane %v756, 2
        %v765 = vrot.slane %v758, 2
        %v766 = vsel %vm340, %v764, %v765
        %v767 = vrot.slane %v757, 2
        %v768 = vrot.slane %v759, 2
        %v769 = vsel %vm340, %v767, %v768
        %770 = vrot.lane.b32.xlu0 %v766, 126
        %v771 = vpop.permute.xlu0 %770
        %772 = vrot.lane.b32.xlu0 %v769, 126
        %v773 = vpop.permute.xlu0 %772
        %774 = vrot.lane.b32.xlu0 %v765, 126
        %v775 = vpop.permute.xlu0 %774
        %776 = vrot.lane.b32.xlu0 %v768, 126
        %v777 = vpop.permute.xlu0 %776
        %v778 = vsel %vm257, %v771, %v773
        %v779 = vsel %vm257, %v775, %v777
        %v782 = vadd.f32 %v753, %v778
        %v783 = vadd.f32 %v754, %v779
        %784 = vst [vmem:[%s176] sm:$0xff] %v404
        %785 = vst [vmem:[%s176 + $0x8] sm:$0x3f] %v405
        %786 = vst [vmem:[%s176 + $0x10] sm:$0xff] %v593
        %787 = vst [vmem:[%s176 + $0x18] sm:$0x3f] %v594
        %788 = vst [vmem:[%s176 + $0x20] sm:$0xff] %v782
        %789 = vst [vmem:[%s176 + $0x28] sm:$0x3f] %v783
        %v790 = vmax.f32 %v404, 0.0
        %v791 = vmax.f32 %v405, 0.0
        %v792 = vmax.f32 %v593, 0.0
        %v793 = vmax.f32 %v594, 0.0
        %v794 = vmax.f32 %v782, 0.0
        %v795 = vmax.f32 %v783, 0.0
        %796 = vst [vmem:[%s181] sm:$0xff] %v790
        %797 = vst [vmem:[%s181 + $0x8] sm:$0x3f] %v791
        %798 = vst [vmem:[%s181 + $0x10] sm:$0xff] %v792
        %799 = vst [vmem:[%s181 + $0x18] sm:$0x3f] %v793
        %800 = vst [vmem:[%s181 + $0x20] sm:$0xff] %v794
        %801 = vst [vmem:[%s181 + $0x28] sm:$0x3f] %v795
        %p802 = scmp.lt.s32.totalorder %s22, 1
        %s803 = scalar_select %p802, %s22, 1
        %s804 = smul.addr %s803, 6
        %s805 = smul.addr %s804, 8
        %s806 = scalar_lea.vmem %s2, %s805
        %p807 = scmp.lt.s32.totalorder %s22, 1
        %s808 = scalar_select %p807, %s22, 1
        %s809 = smul.addr %s808, 6
        %s810 = smul.addr %s809, 8
        %s811 = scalar_lea.vmem %s3, %s810
        // Predicated region
        $region29: #{tpu_custom_call.1} parent=23 // pred_check
          %p812 = pneg %p66
        $region30: #{tpu_custom_call.1} parent=23 // pred_check_branch
          %814 = sbr.rel (%p812) target = $region32
        $region31: #{tpu_custom_call.1} parent=23 // pred_region
          _
        $region32: #{tpu_custom_call.1} parent=23 // pred_fallthru
          _
        // Predicated region
        $region33: #{tpu_custom_call.1} parent=23 // pred_check
          %p815 = pneg %p92
        $region34: #{tpu_custom_call.1} parent=23 // pred_check_branch
          %817 = sbr.rel (%p815) target = $region36
        $region35: #{tpu_custom_call.1} parent=23 // pred_region
          _
        $region36: #{tpu_custom_call.1} parent=23 // pred_fallthru
          _
      $region24: #{tpu_custom_call.1} parent=5 // pred_fallthru
        _
      %p818 = scmp.le.s32.totalorder 2, %s17
      // Predicated region
      $region37: #{tpu_custom_call.1} parent=5 // pred_check
        %p819 = pneg %p818
      $region38: #{tpu_custom_call.1} parent=5 // pred_check_branch
        %821 = sbr.rel (%p819) target = $region40
      $region39: #{tpu_custom_call.1} parent=5 // pred_region
        %s822 = ssub.s32 %s17, 2
        // Predicated region
        $region41: #{tpu_custom_call.1} parent=39 // pred_check
          %p823 = pneg %p72
        $region42: #{tpu_custom_call.1} parent=39 // pred_check_branch
          %825 = sbr.rel (%p823) target = $region44
        $region43: #{tpu_custom_call.1} parent=39 // pred_region
          %p826 = scmp.lt.s32.totalorder %s23, 1
          %s827 = scalar_select %p826, %s23, 1
          %s828 = smul.addr %s827, 6
          %s829 = smul.addr %s828, 8
          %s830 = scalar_lea.vmem %s2, %s829
        $region44: #{tpu_custom_call.1} parent=39 // pred_fallthru
          _
        // Predicated region
        $region45: #{tpu_custom_call.1} parent=39 // pred_check
          %p831 = pneg %p98
        $region46: #{tpu_custom_call.1} parent=39 // pred_check_branch
          %833 = sbr.rel (%p831) target = $region48
        $region47: #{tpu_custom_call.1} parent=39 // pred_region
          %p834 = scmp.lt.s32.totalorder %s23, 1
          %s835 = scalar_select %p834, %s23, 1
          %s836 = smul.addr %s835, 6
          %s837 = smul.addr %s836, 8
          %s838 = scalar_lea.vmem %s3, %s837
        $region48: #{tpu_custom_call.1} parent=39 // pred_fallthru
          _
      $region40: #{tpu_custom_call.1} parent=5 // pred_fallthru
        _
    $region6: #{tpu_custom_call.1} parent=1 // loop_footer
      %s21 = sadd.s32 1, %s17
    $region7: #{tpu_custom_call.1} parent=1 // loop_footer_branch
      %16 = sbr.rel target = $region3
    $region8: #{tpu_custom_call.1} parent=1 // loop_exit
      _
    %839 = vsyncpa [#allocation5], 1
    %s840 = scalar_lea.sflag [#allocation5], 1
    %841 = vsyncpa %s840, 1

</llo_original>
